<compile_context>
chip_gen: v7x
topology: tpu7x:2x2x1
jax: 0.10.0
libtpu: 0.0.40
codegen_flags: <defaults>
</compile_context>

<pallas_src>
import jax
import jax.numpy as jnp
from jax.experimental import pallas as pl
from jax.experimental.pallas import tpu as pltpu

# ---- synthetic Channel configuration (Gain -> Distortion) -------------------
GAIN_MIN_DB, GAIN_MAX_DB = -24.0, 24.0     # dasp_pytorch.Gain parameter range
DRIVE_MIN_DB, DRIVE_MAX_DB = 0.0, 24.0     # dasp_pytorch.Distortion range
NUM_PARAMS = 2                             # 1 (gain_db) + 1 (drive_db)

LANE = 128
ROW_BLOCK = 8                              # sublane-dense row tile
MAX_T_TILE = 64 * 1024                     # 8 x 64K f32 = 2 MiB per block


def _round_up(x, m):
    return ((x + m - 1) // m) * m


def _peak_kernel(x_ref, peak_ref):
    """Pass 1: accumulate per-row max(|x|) over time tiles (P3 accumulator)."""
    @pl.when(pl.program_id(1) == 0)
    def _():
        peak_ref[...] = jnp.zeros_like(peak_ref)

    tile_peak = jnp.max(jnp.abs(x_ref[...]), axis=-1, keepdims=True)  # (8, 1)
    peak_ref[...] = jnp.maximum(peak_ref[...], tile_peak)


def _apply_kernel(scale_ref, x_ref, o_ref):
    """Pass 2: out = tanh(scale_row * x).

    scale_row folds gain, the (only live) peak clamp, and the drive into one
    per-row scalar.  scale_ref: (8, 1), x_ref/o_ref: (8, T_TILE).
    """
    o_ref[...] = jnp.tanh(x_ref[...] * scale_ref[...]).astype(o_ref.dtype)


def channel_forward(audio: jax.Array, params: jax.Array) -> jax.Array:
    """Pallas Channel.forward. audio: (B, C, T), params: (B, NUM_PARAMS)."""
    B, C, T = audio.shape
    assert params.ndim == 2 and params.shape == (B, NUM_PARAMS)
    orig_dtype = audio.dtype

    R = B * C
    R_pad = _round_up(R, ROW_BLOCK)
    T_pad_lane = _round_up(T, LANE)
    if T_pad_lane <= MAX_T_TILE:
        t_tile, T_pad = T_pad_lane, T_pad_lane
    else:
        t_tile, T_pad = MAX_T_TILE, _round_up(T, MAX_T_TILE)
    n_row_blocks = R_pad // ROW_BLOCK
    n_t_tiles = T_pad // t_tile

    x = audio.astype(jnp.float32).reshape(R, T)
    x = jnp.pad(x, ((0, R_pad - R), (0, T_pad - T)))   # zero pad (peak-safe)

    # ---- pass 1: tiled per-row peak |x| --------------------------------------
    peak = pl.pallas_call(
        _peak_kernel,
        out_shape=jax.ShapeDtypeStruct((R_pad, 1), jnp.float32),
        grid=(n_row_blocks, n_t_tiles),
        in_specs=[pl.BlockSpec((ROW_BLOCK, t_tile), lambda r, t: (r, t))],
        out_specs=pl.BlockSpec((ROW_BLOCK, 1), lambda r, t: (r, 0)),
        compiler_params=pltpu.CompilerParams(
            dimension_semantics=("parallel", "arbitrary")),
    )(x)

    # ---- tiny per-row scalar math in plain JAX (loop-invariant for pass 2) ---
    p_sig = jax.nn.sigmoid(params.astype(jnp.float32))       # process_normalized
    gain_db = GAIN_MIN_DB + (GAIN_MAX_DB - GAIN_MIN_DB) * p_sig[:, 0]
    drive_db = DRIVE_MIN_DB + (DRIVE_MAX_DB - DRIVE_MIN_DB) * p_sig[:, 1]
    gain_lin = 10.0 ** (gain_db / 20.0)                      # (B,)
    drive_lin = 10.0 ** (drive_db / 20.0)                    # (B,)
    gain_row = jnp.pad(jnp.repeat(gain_lin, C), (0, R_pad - R),
                       constant_values=1.0)                  # (R_pad,)
    drive_row = jnp.pad(jnp.repeat(drive_lin, C), (0, R_pad - R),
                        constant_values=1.0)
    peak_row = peak[:, 0]                                    # (R_pad,)
    # ensure_max_of_audio after Gain: peak_after_gain = gain * max|x| (gain > 0)
    post_gain_peak = gain_row * peak_row
    clamp = jnp.where(post_gain_peak > 1.0,
                      1.0 / jnp.maximum(peak_row, 1e-30),
                      gain_row)
    scale = (drive_row * clamp).reshape(R_pad, 1).astype(jnp.float32)

    # ---- pass 2: streaming tanh(scale * x) -----------------------------------
    # (second ensure_max_of_audio omitted exactly: |tanh| <= 1 => no-op clamp)
    y = pl.pallas_call(
        _apply_kernel,
        out_shape=jax.ShapeDtypeStruct((R_pad, T_pad), jnp.float32),
        grid=(n_row_blocks, n_t_tiles),
        in_specs=[
            pl.BlockSpec((ROW_BLOCK, 1), lambda r, t: (r, 0)),
            pl.BlockSpec((ROW_BLOCK, t_tile), lambda r, t: (r, t)),
        ],
        out_specs=pl.BlockSpec((ROW_BLOCK, t_tile), lambda r, t: (r, t)),
        compiler_params=pltpu.CompilerParams(
            dimension_semantics=("parallel", "parallel")),
    )(scale, x)

    return y[:R, :T].reshape(B, C, T).astype(orig_dtype)


def channel_forward_ref(audio, params):
    """Pure-JAX reference mirroring the original torch module semantics."""
    p_sig = jax.nn.sigmoid(params.astype(jnp.float32))
    gain_db = GAIN_MIN_DB + (GAIN_MAX_DB - GAIN_MIN_DB) * p_sig[:, 0]
    drive_db = DRIVE_MIN_DB + (DRIVE_MAX_DB - DRIVE_MIN_DB) * p_sig[:, 1]
    x = audio.astype(jnp.float32)
    x = x * (10.0 ** (gain_db / 20.0))[:, None, None]
    peak = jnp.max(jnp.abs(x), axis=-1, keepdims=True)
    x = x * jnp.where(peak > 1.0, 1.0 / peak, 1.0)
    x = jnp.tanh(x * (10.0 ** (drive_db / 20.0))[:, None, None])
    peak = jnp.max(jnp.abs(x), axis=-1, keepdims=True)
    x = x * jnp.where(peak > 1.0, 1.0 / peak, 1.0)
    return x.astype(audio.dtype)


if __name__ == "__main__":
    key = jax.random.PRNGKey(0)
    k_audio, k_params = jax.random.split(key)

    B, C, T = 2, 2, 2048
    audio = 0.5 * jax.random.normal(k_audio, (B, C, T), dtype=jnp.float32)
    params = jax.random.normal(k_params, (B, NUM_PARAMS), dtype=jnp.float32)

    out = jax.block_until_ready(channel_forward(audio, params))
    ref = jax.block_until_ready(channel_forward_ref(audio, params))

    assert out.shape == (B, C, T) and out.dtype == jnp.float32
    assert jnp.allclose(out, ref, atol=1e-5, rtol=1e-5), "mismatch vs reference"

    print("KERNEL_OK")
</pallas_src>

<mosaic_0001>
module attributes {stable_mosaic.version = 11 : i64} {
  func.func @_peak_kernel(%arg0: i32, %arg1: i32, %arg2: memref<8x2048xf32, #tpu.memory_space<vmem>>, %arg3: memref<8x1xf32, #tpu.memory_space<vmem>>) attributes {dimension_semantics = [#tpu.dimension_semantics<parallel>, #tpu.dimension_semantics<arbitrary>], iteration_bounds = array<i64: 1, 1>, scalar_prefetch = 0 : i64, scratch_operands = 0 : i64, tpu.core_type = #tpu.core_type<tc>, window_params = [{transform_indices = @transform_0, window_bounds = array<i64: 8, 2048>}, {transform_indices = @transform_1, window_bounds = array<i64: 8, 1>}]} {
    %c0_i32 = arith.constant 0 : i32
    %0 = arith.cmpi eq, %arg1, %c0_i32 : i32
    %1 = arith.extui %0 : i1 to i32
    %c0_i32_0 = arith.constant 0 : i32
    %2 = arith.cmpi ne, %1, %c0_i32_0 : i32
    scf.if %2 {
      %cst_6 = arith.constant 0.000000e+00 : f32
      %10 = vector.broadcast %cst_6 : f32 to vector<8x1xf32>
      %c0_7 = arith.constant 0 : index
      %c0_8 = arith.constant 0 : index
      %11 = vector.load %arg3[%c0_7, %c0_8] : memref<8x1xf32, #tpu.memory_space<vmem>>, vector<8x1xf32>
      tpu.vector_store %arg3[%c0_7, %c0_8], %10 {strides = array<i32>} : memref<8x1xf32, #tpu.memory_space<vmem>>, vector<8x1xf32>,
    } else {
    }
    %c0 = arith.constant 0 : index
    %c0_1 = arith.constant 0 : index
    %3 = vector.load %arg2[%c0, %c0_1] : memref<8x2048xf32, #tpu.memory_space<vmem>>, vector<8x2048xf32>
    %4 = math.absf %3 : vector<8x2048xf32>
    %cst = arith.constant dense<0xFF800000> : vector<8xf32>
    %5 = vector.multi_reduction <maximumf>, %4, %cst [1] : vector<8x2048xf32> to vector<8xf32>
    %6 = vector.shape_cast %5 : vector<8xf32> to vector<8x1xf32>
    %c0_2 = arith.constant 0 : index
    %c0_3 = arith.constant 0 : index
    %7 = vector.load %arg3[%c0_2, %c0_3] : memref<8x1xf32, #tpu.memory_space<vmem>>, vector<8x1xf32>
    %8 = arith.maximumf %7, %6 : vector<8x1xf32>
    %c0_4 = arith.constant 0 : index
    %c0_5 = arith.constant 0 : index
    %9 = vector.load %arg3[%c0_4, %c0_5] : memref<8x1xf32, #tpu.memory_space<vmem>>, vector<8x1xf32>
    tpu.vector_store %arg3[%c0_4, %c0_5], %8 {strides = array<i32>} : memref<8x1xf32, #tpu.memory_space<vmem>>, vector<8x1xf32>,
    return
  }
  func.func @transform_0(%arg0: i32, %arg1: i32) -> (i32, i32) {
    %c0_i32 = arith.constant 0 : i32
    return %arg0, %arg1 : i32, i32
  }
  func.func @transform_1(%arg0: i32, %arg1: i32) -> (i32, i32) {
    %c0_i32 = arith.constant 0 : i32
    %c0_i32_0 = arith.constant 0 : i32
    return %arg0, %c0_i32 : i32, i32
  }
}

</mosaic_0001>

<llo_original>
// kernel: tpu_custom_call.1
$region0: #{tpu_custom_call.1}
  #allocation0 [shape = 'u32[]', space=smem, size = 0x4, offset = 0x4, fixed_abs, tag = 'smem constant byte address 0x4 - core index']
  #allocation1 [shape = 'u32[144,128]{1,0:T(1,128)}', space=vmem, size = 0x12000, scoped, tag = 'internal scratch']
  %s0 = inlined_call_operand.hbm [shape: f32[8,2048], index: 0, kind: input, shape index: {}]
  %s1 = inlined_call_operand.vmem [shape: f32[8,1], index: 1, kind: output, shape index: {}]
  %s2 = sld [smem:[#allocation0]]
  $region22: #{tpu_custom_call.1} parent=0
    _
  %s4 = ssub.s32 1, %s2
  %s5 = scalar_select 0, %s4, %s2
  $region1: #{tpu_custom_call.1} parent=0
    #allocation2 [shape = 'u8[65536]{0}', space=vmem, size = 0x10000, scoped, tag = 'input window, operand 0, single buffered']
    #allocation3 [shape = 's32[1]{0}', space=sflag, size = 0x4, scoped, tag = 'scoped memory for tpu_custom_call.1']
    %6 = vsyncpa [#allocation3], 0
    // Predicated region
    $region2: #{tpu_custom_call.1} parent=1 // pred_check
      _
    $region3: #{tpu_custom_call.1} parent=1 // pred_check_branch
      %8 = sbr.rel (0) target = $region5
    $region4: #{tpu_custom_call.1} parent=1 // pred_region
      %s10 = ssub.s32 2048, 2048
      %11 = vsyncadd [#allocation3], %s10
      %s13 = sshll.u32 [#allocation2], 4
      %s14 = int_to_ptr.vmem [resolvable:$true] %s13
      %16 = dma.hbm_to_vmem [thread:$0]  %s0, 2048, %s14, [#allocation3]
    $region5: #{tpu_custom_call.1} parent=1 // pred_fallthru
      _
    // Predicated region
    $region6: #{tpu_custom_call.1} parent=1 // pred_check
      _
    $region7: #{tpu_custom_call.1} parent=1 // pred_check_branch
      %18 = sbr.rel (0) target = $region9
    $region8: #{tpu_custom_call.1} parent=1 // pred_region
      %19 = dma.done [#allocation3], 2048
    $region9: #{tpu_custom_call.1} parent=1 // pred_fallthru
      _
    %p20 = scmp.eq.s32.totalorder 0, 0
    // Predicated region
    $region10: #{tpu_custom_call.1} parent=1 // pred_check
      %p21 = pneg %p20
    $region11: #{tpu_custom_call.1} parent=1 // pred_check_branch
      %23 = sbr.rel (%p21) target = $region13
    $region12: #{tpu_custom_call.1} parent=1 // pred_region
      %vm24 = vcmask 7168
      %25 = vst.msk [vmem:[%s1] sm:$0xff] %vm24, 0.0
    $region13: #{tpu_custom_call.1} parent=1 // pred_fallthru
      _
    %v26 = vld [vmem:[#allocation2] sm:$0xff]
    %v27 = vld [vmem:[#allocation2 + $0x8] sm:$0xff]
    %v28 = vld [vmem:[#allocation2 + $0x10] sm:$0xff]
    %v29 = vld [vmem:[#allocation2 + $0x18] sm:$0xff]
    %v30 = vld [vmem:[#allocation2 + $0x20] sm:$0xff]
    %v31 = vld [vmem:[#allocation2 + $0x28] sm:$0xff]
    %v32 = vld [vmem:[#allocation2 + $0x30] sm:$0xff]
    %v33 = vld [vmem:[#allocation2 + $0x38] sm:$0xff]
    %v34 = vld [vmem:[#allocation2 + $0x40] sm:$0xff]
    %v35 = vld [vmem:[#allocation2 + $0x48] sm:$0xff]
    %v36 = vld [vmem:[#allocation2 + $0x50] sm:$0xff]
    %v37 = vld [vmem:[#allocation2 + $0x58] sm:$0xff]
    %v38 = vld [vmem:[#allocation2 + $0x60] sm:$0xff]
    %v39 = vld [vmem:[#allocation2 + $0x68] sm:$0xff]
    %v40 = vld [vmem:[#allocation2 + $0x70] sm:$0xff]
    %v41 = vld [vmem:[#allocation2 + $0x78] sm:$0xff]
    %v42 = vand.u32 2147483647, %v26
    %v43 = vand.u32 2147483647, %v27
    %v44 = vand.u32 2147483647, %v28
    %v45 = vand.u32 2147483647, %v29
    %v46 = vand.u32 2147483647, %v30
    %v47 = vand.u32 2147483647, %v31
    %v48 = vand.u32 2147483647, %v32
    %v49 = vand.u32 2147483647, %v33
    %v50 = vand.u32 2147483647, %v34
    %v51 = vand.u32 2147483647, %v35
    %v52 = vand.u32 2147483647, %v36
    %v53 = vand.u32 2147483647, %v37
    %v54 = vand.u32 2147483647, %v38
    %v55 = vand.u32 2147483647, %v39
    %v56 = vand.u32 2147483647, %v40
    %v57 = vand.u32 2147483647, %v41
    %v58 = vmax.f32 %v42, %v46
    %v59 = vmax.f32 %v43, %v47
    %v60 = vmax.f32 %v44, %v48
    %v61 = vmax.f32 %v45, %v49
    %v62 = vmax.f32 %v58, %v50
    %v63 = vmax.f32 %v59, %v51
    %v64 = vmax.f32 %v60, %v52
    %v65 = vmax.f32 %v61, %v53
    %v66 = vmax.f32 %v62, %v54
    %v67 = vmax.f32 %v63, %v55
    %v68 = vmax.f32 %v64, %v56
    %v69 = vmax.f32 %v65, %v57
    %v70 = vmax.f32 %v66, %v67
    %v71 = vmax.f32 %v68, %v69
    %v72 = vmax.f32 %v70, %v71
    %73 = vmax.xlane.f32.xlu0 %v72
    %v74 = vpop.xlane.xlu0 %73
    %v75 = vld [vmem:[%s1] sm:$0xff]
    %v76 = vmax.f32 %v75, %v74
    %vm77 = vcmask 7168
    %78 = vst.msk [vmem:[%s1] sm:$0xff] %vm77, %v76
    // Predicated region
    $region14: #{tpu_custom_call.1} parent=1 // pred_check
      _
    $region15: #{tpu_custom_call.1} parent=1 // pred_check_branch
      %80 = sbr.rel (0) target = $region17
    $region16: #{tpu_custom_call.1} parent=1 // pred_region
      _
    $region17: #{tpu_custom_call.1} parent=1 // pred_fallthru
      _
    // Predicated region
    $region18: #{tpu_custom_call.1} parent=1 // pred_check
      _
    $region19: #{tpu_custom_call.1} parent=1 // pred_check_branch
      %82 = sbr.rel (0) target = $region21
    $region20: #{tpu_custom_call.1} parent=1 // pred_region
      _
    $region21: #{tpu_custom_call.1} parent=1 // pred_fallthru
      _
    %83 = vsyncpa [#allocation3], 1

</llo_original>
